<compile_context>
chip_gen: v7x
topology: tpu7x:2x2x1
jax: 0.10.0
libtpu: 0.0.40
codegen_flags: <defaults>
</compile_context>

<pallas_src>
import functools

import jax
import jax.numpy as jnp
from jax.experimental import pallas as pl
from jax.experimental.pallas import tpu as pltpu


def _round_up(x, m):
    return (x + m - 1) // m * m


def _vmem_capacity_bytes():
    """Per-core VMEM capacity; conservative 64 MiB (v7x) if the query fails."""
    try:
        info = pltpu.get_tpu_info()
        cap = getattr(info, "vmem_capacity_bytes", None)
        if cap:
            return int(cap)
    except Exception:
        pass
    return 64 * 1024 * 1024


def _tile_budget(itemsize):
    """(target input-block bytes, scoped vmem limit) for this chip."""
    cap = _vmem_capacity_bytes()
    # 2x double-buffered (input + output) blocks => 4 * block_bytes live in
    # VMEM.  cap//16 keeps that at <= cap/4 (<=16 MiB on v7x's 64 MiB/TC,
    # <=32 MiB on v5e/v6e's 128 MiB); 4 MiB is already on the measured ~85%
    # HBM-roofline plateau, so cap growth there.
    block_bytes = int(min(4 << 20, max(1 << 20, cap // 16)))
    # Raise the scoped VMEM limit on the big-VMEM chips (v5e/v6e: 128 MiB
    # physical); stay at 32 MiB on v7x (64 MiB physical per TensorCore).
    vmem_limit = (64 << 20) if cap >= (96 << 20) else (32 << 20)
    return block_bytes, vmem_limit


def _choose_tiles(rows, cols, itemsize, block_target_bytes):
    """Pick a lane-dense (block_rows, block_cols) tile.

    block_cols is a multiple of 128 (lane-dense, unmasked stores except at the
    ragged edge block); block_rows is a multiple of 8 and sized so one input
    block is ~block_target_bytes in the INPUT dtype.
    """
    cols128 = _round_up(cols, 128)
    block_cols = cols128 if cols128 <= 2048 else 512
    max_rows = max(8, (block_target_bytes // (block_cols * itemsize)) // 8 * 8)
    block_rows = min(_round_up(rows, 8), max_rows)

    # v7x megacore / pipelining: for non-trivial tensors make sure the
    # ("parallel","parallel") grid has >= 4 steps so both TensorCores get
    # work and load/compute/store actually overlap.
    if rows * cols * itemsize > (2 << 20):
        while (block_rows > 8
               and pl.cdiv(rows, block_rows) * pl.cdiv(cols, block_cols) < 4):
            block_rows = max(8, ((block_rows // 2) + 7) // 8 * 8)
    return block_rows, block_cols


def _actlsq_kernel(x_ref, p_ref, o_ref, *, per_row):
    """One (block_rows, block_cols) tile.

    p_ref packs [alpha, 1/alpha, zp, zp*alpha]:
      per_row=True  -> (block_rows, 4): per-row broadcast along lanes (NCHW).
      per_row=False -> (4, block_cols): per-lane broadcast along sublanes.
    All math in f32 (v5e has no bf16 VPU; kernel is HBM-bound anyway).
    """
    x = x_ref[...].astype(jnp.float32)
    p = p_ref[...]
    if per_row:
        alpha = p[:, 0:1]
        inva = p[:, 1:2]
        zp = p[:, 2:3]
        off = p[:, 3:4]
    else:
        alpha = p[0:1, :]
        inva = p[1:2, :]
        zp = p[2:3, :]
        off = p[3:4, :]
    q = jnp.round(jnp.clip(x * inva + zp, -1.0, 1.0))
    o_ref[...] = (q * alpha - off).astype(o_ref.dtype)


def _actlsq_tiled(x2d, packed, *, per_row):
    """Run the tiled kernel over a 2D slab.

    x2d:    (rows, cols), any float dtype (kept in its dtype at HBM).
    packed: (rows, 4) f32 if per_row else (4, cols) f32.
    """
    rows, cols = x2d.shape
    itemsize = jnp.dtype(x2d.dtype).itemsize
    block_bytes, vmem_limit = _tile_budget(itemsize)
    block_rows, block_cols = _choose_tiles(rows, cols, itemsize, block_bytes)
    grid = (pl.cdiv(rows, block_rows), pl.cdiv(cols, block_cols))

    if per_row:
        p_block = (block_rows, 4)          # last dim == full array dim (4)
        p_map = lambda i, j: (i, 0)
    else:
        p_block = (4, block_cols)          # sublane dim == full array dim (4)
        p_map = lambda i, j: (0, j)

    return pl.pallas_call(
        functools.partial(_actlsq_kernel, per_row=per_row),
        out_shape=jax.ShapeDtypeStruct((rows, cols), x2d.dtype),
        grid_spec=pltpu.PrefetchScalarGridSpec(
            num_scalar_prefetch=0,
            grid=grid,
            in_specs=[
                pl.BlockSpec((block_rows, block_cols), lambda i, j: (i, j)),
                pl.BlockSpec(p_block, p_map),
            ],
            out_specs=pl.BlockSpec((block_rows, block_cols), lambda i, j: (i, j)),
        ),
        compiler_params=pltpu.CompilerParams(
            # Both axes independent -> shard across the two v7x TensorCores.
            dimension_semantics=("parallel", "parallel"),
            vmem_limit_bytes=vmem_limit,
        ),
    )(x2d, packed)


def actlsq_bi_forward(x, alpha, zero_point):
    """ActLSQ_bi.forward.

    x: (B, F) or (B, C, H, W) (NCHW); any float dtype.
    alpha, zero_point: (in_features,) where in_features = F or C.
    Output has the same dtype/shape as x.
    """
    alpha = alpha.astype(jnp.float32)
    zp_r = jnp.round(zero_point.astype(jnp.float32))   # forward value of STE round
    inva = 1.0 / alpha                                  # hoisted reciprocal
    off = zp_r * alpha                                  # fused (q - zp)*alpha constant

    if x.ndim == 2:
        _, f = x.shape
        packed = jnp.stack([alpha, inva, zp_r, off], axis=0)       # (4, F)
        return _actlsq_tiled(x, packed, per_row=False)
    elif x.ndim == 4:
        b, c, h, w = x.shape
        hw = h * w
        if hw % 128 == 0:
            # FREE view (B*C, H*W): spatial axis is already lane-dense.
            x2d = x.reshape(b * c, hw)
            packed = jnp.stack(
                [jnp.tile(alpha, b), jnp.tile(inva, b),
                 jnp.tile(zp_r, b), jnp.tile(off, b)], axis=1)     # (B*C, 4)
            out2d = _actlsq_tiled(x2d, packed, per_row=True)
        else:
            # FREE view (B, C*H*W): keeps stores lane-dense when H*W is not a
            # multiple of 128 (e.g. 7x7, 14x14); per-channel params expanded
            # along lanes (each repeated H*W times), reused across all B rows.
            x2d = x.reshape(b, c * hw)
            packed = jnp.stack(
                [jnp.repeat(alpha, hw), jnp.repeat(inva, hw),
                 jnp.repeat(zp_r, hw), jnp.repeat(off, hw)], axis=0)  # (4, C*H*W)
            out2d = _actlsq_tiled(x2d, packed, per_row=False)
        return out2d.reshape(b, c, h, w)
    else:
        raise ValueError("ActLSQ_bi expects a 2D or 4D input")


def _reference(x, alpha, zero_point):
    """Pure-JAX reference mirroring the PyTorch forward (true division)."""
    xf = x.astype(jnp.float32)
    zp = jnp.round(zero_point.astype(jnp.float32))
    a = alpha.astype(jnp.float32)
    if x.ndim == 2:
        a = a[None, :]
        z = zp[None, :]
    else:
        a = a[None, :, None, None]
        z = zp[None, :, None, None]
    q = jnp.round(jnp.clip(xf / a + z, -1.0, 1.0))
    return ((q - z) * a).astype(x.dtype)


if __name__ == "__main__":
    key = jax.random.PRNGKey(0)
    k_x, k_a, k_z, k_x2, k_x3 = jax.random.split(key, 5)

    # Module parameters (in_features = C = 4), deterministic init.
    B, C, H, W = 2, 4, 16, 16
    alpha = jax.random.uniform(k_a, (C,), jnp.float32, 0.5, 1.5)
    zero_point = 0.3 * jax.random.normal(k_z, (C,), jnp.float32)

    # --- 4D NCHW, H*W % 128 == 0 -> (B*C, H*W) per-row path, f32 ---
    x4 = jax.random.normal(k_x, (B, C, H, W), jnp.float32)
    out4 = jax.block_until_ready(actlsq_bi_forward(x4, alpha, zero_point))
    ref4 = _reference(x4, alpha, zero_point)
    assert out4.shape == x4.shape and out4.dtype == x4.dtype
    assert jnp.max(jnp.abs(out4 - ref4)) < 1e-5

    # --- same path with bf16 I/O (bf16 kept at the HBM boundary) ---
    x4b = x4.astype(jnp.bfloat16)
    out4b = jax.block_until_ready(actlsq_bi_forward(x4b, alpha, zero_point))
    ref4b = _reference(x4b, alpha, zero_point)
    assert out4b.dtype == jnp.bfloat16
    assert jnp.max(jnp.abs(out4b.astype(jnp.float32)
                           - ref4b.astype(jnp.float32))) < 3e-2

    # --- 4D NCHW with H*W = 49 (not a multiple of 128) -> (B, C*H*W) path ---
    x4s = jax.random.normal(k_x3, (B, C, 7, 7), jnp.float32)
    out4s = jax.block_until_ready(actlsq_bi_forward(x4s, alpha, zero_point))
    ref4s = _reference(x4s, alpha, zero_point)
    assert out4s.shape == x4s.shape
    assert jnp.max(jnp.abs(out4s - ref4s)) < 1e-5

    # --- 2D path (per-feature broadcast), exercises ragged edge masking ---
    Fdim = 32
    alpha2 = jax.random.uniform(k_a, (Fdim,), jnp.float32, 0.5, 1.5)
    zp2 = 0.3 * jax.random.normal(k_z, (Fdim,), jnp.float32)
    x2 = jax.random.normal(k_x2, (B, Fdim), jnp.float32)
    out2 = jax.block_until_ready(actlsq_bi_forward(x2, alpha2, zp2))
    ref2 = _reference(x2, alpha2, zp2)
    assert out2.shape == x2.shape
    assert jnp.max(jnp.abs(out2 - ref2)) < 1e-5

    print("KERNEL_OK")
</pallas_src>

<mosaic_0001>
module attributes {stable_mosaic.version = 11 : i64} {
  func.func @_actlsq_kernel(%arg0: i32, %arg1: i32, %arg2: memref<8x256xf32, #tpu.memory_space<vmem>>, %arg3: memref<8x4xf32, #tpu.memory_space<vmem>>, %arg4: memref<8x256xf32, #tpu.memory_space<vmem>>) attributes {dimension_semantics = [#tpu.dimension_semantics<parallel>, #tpu.dimension_semantics<parallel>], iteration_bounds = array<i64: 1, 1>, scalar_prefetch = 0 : i64, scratch_operands = 0 : i64, tpu.core_type = #tpu.core_type<tc>, window_params = [{transform_indices = @transform_0, window_bounds = array<i64: 8, 256>}, {transform_indices = @transform_1, window_bounds = array<i64: 8, 4>}, {transform_indices = @transform_2, window_bounds = array<i64: 8, 256>}]} {
    %c0 = arith.constant 0 : index
    %c0_0 = arith.constant 0 : index
    %0 = vector.load %arg2[%c0, %c0_0] : memref<8x256xf32, #tpu.memory_space<vmem>>, vector<8x256xf32>
    %c0_1 = arith.constant 0 : index
    %c0_2 = arith.constant 0 : index
    %1 = vector.load %arg3[%c0_1, %c0_2] : memref<8x4xf32, #tpu.memory_space<vmem>>, vector<8x4xf32>
    %2 = vector.extract_strided_slice %1 {offsets = [0, 0], sizes = [8, 1], strides = [1, 1]} : vector<8x4xf32> to vector<8x1xf32>
    %3 = vector.extract_strided_slice %1 {offsets = [0, 1], sizes = [8, 1], strides = [1, 1]} : vector<8x4xf32> to vector<8x1xf32>
    %4 = vector.extract_strided_slice %1 {offsets = [0, 2], sizes = [8, 1], strides = [1, 1]} : vector<8x4xf32> to vector<8x1xf32>
    %5 = vector.extract_strided_slice %1 {offsets = [0, 3], sizes = [8, 1], strides = [1, 1]} : vector<8x4xf32> to vector<8x1xf32>
    %6 = vector.broadcast %3 : vector<8x1xf32> to vector<8x256xf32>
    %7 = arith.mulf %0, %6 : vector<8x256xf32>
    %8 = vector.broadcast %4 : vector<8x1xf32> to vector<8x256xf32>
    %9 = arith.addf %7, %8 : vector<8x256xf32>
    %cst = arith.constant -1.000000e+00 : f32
    %cst_3 = arith.constant 1.000000e+00 : f32
    %10 = vector.broadcast %cst : f32 to vector<8x256xf32>
    %11 = arith.maximumf %10, %9 : vector<8x256xf32>
    %12 = vector.broadcast %cst_3 : f32 to vector<8x256xf32>
    %13 = arith.minimumf %12, %11 : vector<8x256xf32>
    %14 = math.roundeven %13 : vector<8x256xf32>
    %15 = vector.broadcast %2 : vector<8x1xf32> to vector<8x256xf32>
    %16 = arith.mulf %14, %15 : vector<8x256xf32>
    %17 = vector.broadcast %5 : vector<8x1xf32> to vector<8x256xf32>
    %18 = arith.subf %16, %17 : vector<8x256xf32>
    %c0_4 = arith.constant 0 : index
    %c0_5 = arith.constant 0 : index
    %19 = vector.load %arg4[%c0_4, %c0_5] : memref<8x256xf32, #tpu.memory_space<vmem>>, vector<8x256xf32>
    tpu.vector_store %arg4[%c0_4, %c0_5], %18 {strides = array<i32>} : memref<8x256xf32, #tpu.memory_space<vmem>>, vector<8x256xf32>,
    return
  }
  func.func @transform_0(%arg0: i32, %arg1: i32) -> (i32, i32) {
    %c0_i32 = arith.constant 0 : i32
    return %arg0, %arg1 : i32, i32
  }
  func.func @transform_1(%arg0: i32, %arg1: i32) -> (i32, i32) {
    %c0_i32 = arith.constant 0 : i32
    %c0_i32_0 = arith.constant 0 : i32
    return %arg0, %c0_i32 : i32, i32
  }
  func.func @transform_2(%arg0: i32, %arg1: i32) -> (i32, i32) {
    %c0_i32 = arith.constant 0 : i32
    return %arg0, %arg1 : i32, i32
  }
}

</mosaic_0001>

<llo_original>
// kernel: tpu_custom_call.1
$region0: #{tpu_custom_call.1}
  #allocation0 [shape = 'u32[]', space=smem, size = 0x4, offset = 0x4, fixed_abs, tag = 'smem constant byte address 0x4 - core index']
  #allocation1 [shape = 'u32[144,128]{1,0:T(1,128)}', space=vmem, size = 0x12000, scoped, tag = 'internal scratch']
  %s0 = inlined_call_operand.hbm [shape: f32[8,256], index: 0, kind: input, shape index: {}]
  %s1 = inlined_call_operand.vmem [shape: f32[8,4], index: 1, kind: input, shape index: {}]
  %s2 = inlined_call_operand.hbm [shape: f32[8,256], index: 2, kind: output, shape index: {}]
  %s3 = sld [smem:[#allocation0]]
  $region22: #{tpu_custom_call.1} parent=0
    _
  %s5 = ssub.s32 1, %s3
  %s6 = scalar_select 0, %s5, %s3
  $region1: #{tpu_custom_call.1} parent=0
    #allocation2 [shape = 'u8[8192]{0}', space=vmem, size = 0x2000, scoped, tag = 'input window, operand 0, single buffered']
    #allocation3 [shape = 's32[1]{0}', space=sflag, size = 0x4, scoped, tag = 'scoped memory for tpu_custom_call.1']
    #allocation4 [shape = 's32[1]{0}', space=sflag, size = 0x4, scoped, tag = 'scoped memory for tpu_custom_call.1']
    #allocation5 [shape = 'u8[8192]{0}', space=vmem, size = 0x2000, scoped, tag = 'output window, operand 0, single buffered']
    %7 = vsyncpa [#allocation3], 0
    %8 = vsyncpa [#allocation4], 0
    // Predicated region
    $region2: #{tpu_custom_call.1} parent=1 // pred_check
      _
    $region3: #{tpu_custom_call.1} parent=1 // pred_check_branch
      %10 = sbr.rel (0) target = $region5
    $region4: #{tpu_custom_call.1} parent=1 // pred_region
      %s12 = ssub.s32 256, 256
      %13 = vsyncadd [#allocation3], %s12
      %s15 = sshll.u32 [#allocation2], 4
      %s16 = int_to_ptr.vmem [resolvable:$true] %s15
      %18 = dma.hbm_to_vmem [thread:$0]  %s0, 256, %s16, [#allocation3]
    $region5: #{tpu_custom_call.1} parent=1 // pred_fallthru
      _
    // Predicated region
    $region6: #{tpu_custom_call.1} parent=1 // pred_check
      _
    $region7: #{tpu_custom_call.1} parent=1 // pred_check_branch
      %20 = sbr.rel (0) target = $region9
    $region8: #{tpu_custom_call.1} parent=1 // pred_region
      _
    $region9: #{tpu_custom_call.1} parent=1 // pred_fallthru
      _
    // Predicated region
    $region10: #{tpu_custom_call.1} parent=1 // pred_check
      _
    $region11: #{tpu_custom_call.1} parent=1 // pred_check_branch
      %22 = sbr.rel (0) target = $region13
    $region12: #{tpu_custom_call.1} parent=1 // pred_region
      %23 = dma.done [#allocation3], 256
    $region13: #{tpu_custom_call.1} parent=1 // pred_fallthru
      _
    %v24 = vld [vmem:[#allocation2] sm:$0xff]
    %v25 = vld [vmem:[#allocation2 + $0x8] sm:$0xff]
    %v26 = vld [vmem:[%s1] sm:$0xff]
    %28 = vset.pattern.permute.xlu0 1
    %29 = vperm.xlu0 %28, %v26
    %v30 = vpop.permute.xlu0 %29
    %v32 = vmul.f32 %v24, %v30
    %v33 = vmul.f32 %v25, %v30
    %34 = vset.pattern.permute.xlu0 2
    %35 = vperm.xlu0 %34, %v26
    %v36 = vpop.permute.xlu0 %35
    %v38 = vadd.f32 %v32, %v36
    %v39 = vadd.f32 %v33, %v36
    %v40 = vmax.f32 %v38, -1.0
    %v41 = vmax.f32 %v39, -1.0
    %v42 = vmin.f32 %v40, 1.0
    %v43 = vmin.f32 %v41, 1.0
    %v44 = vround.ne.pseudo %v42
    %v45 = vround.ne.pseudo %v43
    %46 = vset.pattern.permute.xlu0 0
    %47 = vperm.xlu0 %46, %v26
    %v48 = vpop.permute.xlu0 %47
    %v50 = vmul.f32 %v44, %v48
    %v51 = vmul.f32 %v45, %v48
    %52 = vset.pattern.permute.xlu0 3
    %53 = vperm.xlu0 %52, %v26
    %v54 = vpop.permute.xlu0 %53
    %v56 = vsub.f32 %v50, %v54
    %v57 = vsub.f32 %v51, %v54
    %58 = vst [vmem:[#allocation5] sm:$0xff] %v56
    %59 = vst [vmem:[#allocation5 + $0x8] sm:$0xff] %v57
    // Predicated region
    $region14: #{tpu_custom_call.1} parent=1 // pred_check
      _
    $region15: #{tpu_custom_call.1} parent=1 // pred_check_branch
      %61 = sbr.rel (0) target = $region17
    $region16: #{tpu_custom_call.1} parent=1 // pred_region
      %s63 = ssub.s32 256, 256
      %64 = vsyncadd [#allocation4], %s63
      %s66 = sshll.u32 [#allocation5], 4
      %s67 = int_to_ptr.vmem [resolvable:$true] %s66
      %69 = dma.vmem_to_hbm [thread:$0]  %s67, 256, %s2, [#allocation4]
    $region17: #{tpu_custom_call.1} parent=1 // pred_fallthru
      _
    // Predicated region
    $region18: #{tpu_custom_call.1} parent=1 // pred_check
      _
    $region19: #{tpu_custom_call.1} parent=1 // pred_check_branch
      %71 = sbr.rel (0) target = $region21
    $region20: #{tpu_custom_call.1} parent=1 // pred_region
      %72 = dma.done [#allocation4], 256
    $region21: #{tpu_custom_call.1} parent=1 // pred_fallthru
      _
    %73 = vsyncpa [#allocation3], 1
    %74 = vsyncpa [#allocation4], 1

</llo_original>
